<compile_context>
chip_gen: v7x
topology: tpu7x:2x2x1
jax: 0.10.0
libtpu: 0.0.40
codegen_flags: <defaults>
</compile_context>

<pallas_src>
import functools

import jax
import jax.numpy as jnp
from jax.experimental import pallas as pl
from jax.experimental.pallas import tpu as pltpu


def _round_up(x, m):
    return (x + m - 1) // m * m


# ---------------------------------------------------------------------------
# Kernel: fused matmul + bias (+ ReLU).  Single K block, bf16 MXU inputs.
# ---------------------------------------------------------------------------
def _mm_kernel(a_ref, b_ref, bias_ref, o_ref, *, relu):
    r = jnp.dot(a_ref[...], b_ref[...], preferred_element_type=jnp.float32)
    r = r + bias_ref[...]
    if relu:
        r = jnp.maximum(r, 0.0)
    o_ref[...] = r


def matmul_bias_act(a, w, bias, relu):
    """[M,K] @ [K,N]bf16 + bias[N] (+ReLU) -> [M,N]f32 via Pallas."""
    M, K = a.shape
    _, N = w.shape
    a = a.astype(jnp.bfloat16)              # bf16 operand in HBM (halves reads)
    tm_cap = 256 if K > 1024 else 512       # VMEM headroom for large-K on v5e
    tm = min(tm_cap, _round_up(M, 8))
    Mp = _round_up(M, tm)
    tn = 256 if (N > 256 and N % 256 == 0) else N
    a_p = a if Mp == M else jnp.pad(a, ((0, Mp - M), (0, 0)))
    grid = (Mp // tm, N // tn)
    cost = pl.CostEstimate(
        flops=2 * Mp * K * N, transcendentals=0,
        bytes_accessed=Mp * K * 2 + K * N * 2 + N * 4 + Mp * N * 4)
    out = pl.pallas_call(
        functools.partial(_mm_kernel, relu=relu),
        out_shape=jax.ShapeDtypeStruct((Mp, N), jnp.float32),
        grid_spec=pltpu.PrefetchScalarGridSpec(
            num_scalar_prefetch=0,
            grid=grid,
            in_specs=[
                pl.BlockSpec((tm, K), lambda i, j: (i, 0)),
                pl.BlockSpec((K, tn), lambda i, j: (0, j)),
                pl.BlockSpec((1, tn), lambda i, j: (0, j)),
            ],
            out_specs=pl.BlockSpec((tm, tn), lambda i, j: (i, j)),
        ),
        compiler_params=pltpu.CompilerParams(
            dimension_semantics=("parallel", "parallel")),
        cost_estimate=cost,
    )(a_p, w, bias.reshape(1, N))
    return out if Mp == M else out[:M]


# ---------------------------------------------------------------------------
# Kernel: direct KxK stride-1 convolution on a flattened "same grid".
# One bf16 row-slab per M-block, DMA'd only on the first Cout tile and
# double-buffered across M-blocks; KH*KW tap matmuls accumulated in f32;
# bias (+ residual) + ReLU fused in the epilogue.
# ---------------------------------------------------------------------------
def _conv_s1_kernel(*refs, offs, tm, slab_rows, relu, has_res):
    if has_res:
        x_hbm, w_ref, b_ref, res_ref, o_ref, buf, sem = refs
    else:
        x_hbm, w_ref, b_ref, o_ref, buf, sem = refs
        res_ref = None
    i = pl.program_id(0)
    j = pl.program_id(1)
    n_m = pl.num_programs(0)
    slot = i % 2

    def slab_copy(block, slot_):
        row0 = pl.multiple_of(block * tm, 8)
        return pltpu.make_async_copy(
            x_hbm.at[pl.ds(row0, slab_rows), :], buf.at[slot_], sem.at[slot_])

    # Fetch the slab once per M-block (j == 0) and keep it resident across all
    # Cout tiles; prefetch the next M-block's slab so its DMA overlaps the
    # current block's tap matmuls.
    @pl.when(j == 0)
    def _():
        @pl.when(i == 0)
        def _():
            slab_copy(i, slot).start()          # prime the pipeline

        slab_copy(i, slot).wait()

        @pl.when(i + 1 < n_m)
        def _():
            slab_copy(i + 1, 1 - slot).start()  # prefetch next M-block

    slab = buf.at[slot]
    acc = None
    for t, off in enumerate(offs):
        a = slab[pl.ds(off, tm), :]             # bf16 (tm, Cin)
        d = jnp.dot(a, w_ref[t], preferred_element_type=jnp.float32)
        acc = d if acc is None else acc + d
    r = acc + b_ref[...]
    if has_res:
        r = r + res_ref[...]
    if relu:
        r = jnp.maximum(r, 0.0)
    o_ref[...] = r


def conv_s1_direct(x, w, b, padding, relu, residual=None):
    """Stride-1 KxK conv (NHWC) without materialising im2col patches."""
    N, H, W, Cin = x.shape
    n_taps, _, Cout = w.shape
    KH = KW = int(round(n_taps ** 0.5))
    p = padding
    HP, WP = H + 2 * p, W + 2 * p
    Ho, Wo = H + 2 * p - KH + 1, W + 2 * p - KW + 1
    Mo = N * HP * WP                          # rows on the padded "same grid"
    tm = min(256, _round_up(Mo, 8))           # clamped row tile
    nM = -(-Mo // tm)
    Mo_pad = nM * tm
    span = (KH - 1) * WP + (KW - 1)           # extra rows a slab must cover
    slab_rows = tm + span
    G = p * WP + p                            # leading guard rows (zeros)
    L = Mo_pad + span

    # bf16 activation slab in HBM (halves DMA bytes; bit-identical to the old
    # in-kernel f32->bf16 cast).
    xflat = jnp.pad(x.astype(jnp.bfloat16),
                    ((0, 0), (p, p), (p, p), (0, 0))).reshape(Mo, Cin)
    xbig = jnp.pad(xflat, ((G, L - G - Mo), (0, 0)))

    # 128-lane Cout tiles: small live accumulator + more slab-reuse per DMA.
    tn = 128 if Cout % 128 == 0 else Cout
    nN = Cout // tn
    offs = tuple(kh * WP + kw for kh in range(KH) for kw in range(KW))

    in_specs = [
        pl.BlockSpec(memory_space=pl.ANY),                        # stays in HBM
        pl.BlockSpec((n_taps, Cin, tn), lambda i, j: (0, 0, j)),   # weights
        pl.BlockSpec((1, tn), lambda i, j: (0, j)),                # bias
    ]
    args = [xbig, w, b.reshape(1, Cout)]
    has_res = residual is not None
    if has_res:
        rpad = jnp.pad(residual,
                       ((0, 0), (p, HP - p - Ho), (p, WP - p - Wo), (0, 0)))
        rflat = jnp.pad(rpad.reshape(Mo, Cout), ((0, Mo_pad - Mo), (0, 0)))
        in_specs.append(pl.BlockSpec((tm, tn), lambda i, j: (i, j)))
        args.append(rflat)

    cost = pl.CostEstimate(
        flops=2 * Mo_pad * n_taps * Cin * Cout, transcendentals=0,
        bytes_accessed=(nM * slab_rows * Cin * 2
                        + nM * n_taps * Cin * Cout * 2
                        + Mo_pad * Cout * 4 * (2 if has_res else 1)))

    out = pl.pallas_call(
        functools.partial(_conv_s1_kernel, offs=offs, tm=tm,
                          slab_rows=slab_rows, relu=relu, has_res=has_res),
        out_shape=jax.ShapeDtypeStruct((Mo_pad, Cout), jnp.float32),
        grid_spec=pltpu.PrefetchScalarGridSpec(
            num_scalar_prefetch=0,
            grid=(nM, nN),
            in_specs=in_specs,
            out_specs=pl.BlockSpec((tm, tn), lambda i, j: (i, j)),
            scratch_shapes=[pltpu.VMEM((2, slab_rows, Cin), jnp.bfloat16),
                            pltpu.SemaphoreType.DMA((2,))],
        ),
        # Both axes "arbitrary": the manual double-buffered slab prefetch
        # relies on sequential grid order (primed at i == 0).
        compiler_params=pltpu.CompilerParams(
            dimension_semantics=("arbitrary", "arbitrary")),
        cost_estimate=cost,
    )(*args)
    out = out[:Mo].reshape(N, HP, WP, Cout)[:, p:p + Ho, p:p + Wo, :]
    return out


# ---------------------------------------------------------------------------
# im2col path (only for stride-2 convs and 1x1 convs), NHWC, bf16 patches.
# ---------------------------------------------------------------------------
def conv_im2col(x, w, b, stride, padding, relu):
    N, H, W, Cin = x.shape
    n_taps, _, Cout = w.shape
    k = int(round(n_taps ** 0.5))
    Ho = (H + 2 * padding - k) // stride + 1
    Wo = (W + 2 * padding - k) // stride + 1
    xb = x.astype(jnp.bfloat16)        # patches materialise in bf16 (1/2 bytes)
    if n_taps == 1 and stride == 1 and padding == 0:
        patches = xb.reshape(N * H * W, Cin)
    else:
        xp = xb if padding == 0 else jnp.pad(
            xb, ((0, 0), (padding, padding), (padding, padding), (0, 0)))
        sl = [xp[:, i:i + stride * (Ho - 1) + 1:stride,
                 j:j + stride * (Wo - 1) + 1:stride, :]
              for i in range(k) for j in range(k)]
        cat = sl[0] if len(sl) == 1 else jnp.concatenate(sl, axis=-1)
        patches = cat.reshape(N * Ho * Wo, n_taps * Cin)
    out = matmul_bias_act(patches, w.reshape(n_taps * Cin, Cout), b, relu)
    return out.reshape(N, Ho, Wo, Cout)


def conv2d(x, wb, stride=1, padding=0, relu=False, residual=None):
    w, b = wb
    n_taps = w.shape[0]
    if stride == 1 and n_taps > 1:
        return conv_s1_direct(x, w, b, padding=padding, relu=relu,
                              residual=residual)
    assert residual is None
    return conv_im2col(x, w, b, stride=stride, padding=padding, relu=relu)


# ---------------------------------------------------------------------------
# Max pooling: elementwise max of the k*k shifted window slices, lane-dense,
# row- and column-tiled so it stays VMEM-safe at large resolutions.
# ---------------------------------------------------------------------------
def _max_n_kernel(*refs):
    o_ref = refs[-1]
    r = refs[0][...]
    for in_ref in refs[1:-1]:
        r = jnp.maximum(r, in_ref[...])
    o_ref[...] = r


def maxpool2d(x, k, s, ceil_mode=False):
    N, H, W, C = x.shape
    if ceil_mode:
        Ho = -((H - k) // -s) + 1
        Wo = -((W - k) // -s) + 1
    else:
        Ho = (H - k) // s + 1
        Wo = (W - k) // s + 1
    Hn, Wn = (Ho - 1) * s + k, (Wo - 1) * s + k
    if Hn > H or Wn > W:
        # PyTorch ceil_mode guarantees every window starts inside the input,
        # so -inf padding never dominates a valid output.
        x = jnp.pad(x, ((0, 0), (0, Hn - H), (0, Wn - W), (0, 0)),
                    constant_values=-jnp.inf)
    slices = [x[:, i:i + s * (Ho - 1) + 1:s, j:j + s * (Wo - 1) + 1:s, :]
              .reshape(N * Ho, Wo * C)
              for i in range(k) for j in range(k)]
    R, cols = N * Ho, Wo * C
    tr = min(512, _round_up(R, 8))
    Rp = _round_up(R, tr)
    if Rp != R:
        slices = [jnp.pad(sl, ((0, Rp - R), (0, 0))) for sl in slices]
    # Column tiling (lane tiles <= 4096) keeps k*k double-buffered slices
    # within scoped VMEM at realistic resolutions.
    tc = cols
    if cols > 4096:
        for g in range(Wo, 0, -1):
            if Wo % g == 0 and g * C <= 4096 and (g * C) % 128 == 0:
                tc = g * C
                break
    grid = (Rp // tr, cols // tc)
    out = pl.pallas_call(
        _max_n_kernel,
        out_shape=jax.ShapeDtypeStruct((Rp, cols), x.dtype),
        grid=grid,
        in_specs=[pl.BlockSpec((tr, tc), lambda i, j: (i, j))] * len(slices),
        out_specs=pl.BlockSpec((tr, tc), lambda i, j: (i, j)),
        compiler_params=pltpu.CompilerParams(
            dimension_semantics=("parallel", "parallel")),
    )(*slices)
    return out[:R].reshape(N, Ho, Wo, C)


# ---------------------------------------------------------------------------
# Bilinear x2 upsampling (PyTorch align_corners=False) as a VPU 2-tap stencil.
# ---------------------------------------------------------------------------
def _upsample2x_kernel(x_ref, xwm_ref, xwp_ref,
                       y00_ref, y01_ref, y10_ref, y11_ref, *, hdim):
    x = x_ref[0]                       # (H, W, tc)
    we = 0.25 * xwm_ref[0] + 0.75 * x  # W-even phase
    wo = 0.75 * x + 0.25 * xwp_ref[0]  # W-odd phase

    def up(z):                         # z[i-1] with clamp (outer-dim shift)
        return z if hdim == 1 else jnp.concatenate([z[:1], z[:-1]], axis=0)

    def dn(z):                         # z[i+1] with clamp
        return z if hdim == 1 else jnp.concatenate([z[1:], z[-1:]], axis=0)

    y00_ref[0] = 0.25 * up(we) + 0.75 * we   # H-even, W-even
    y01_ref[0] = 0.25 * up(wo) + 0.75 * wo   # H-even, W-odd
    y10_ref[0] = 0.75 * we + 0.25 * dn(we)   # H-odd,  W-even
    y11_ref[0] = 0.75 * wo + 0.25 * dn(wo)   # H-odd,  W-odd


def upsample_bilinear_2x(x):
    N, H, W, C = x.shape
    tc = 128 if C % 128 == 0 else C
    if W > 1:
        xwm = jnp.concatenate([x[:, :, :1], x[:, :, :-1]], axis=2)
        xwp = jnp.concatenate([x[:, :, 1:], x[:, :, -1:]], axis=2)
    else:
        xwm, xwp = x, x
    spec = pl.BlockSpec((1, H, W, tc), lambda n, c: (n, 0, 0, c))
    y00, y01, y10, y11 = pl.pallas_call(
        functools.partial(_upsample2x_kernel, hdim=H),
        out_shape=tuple(jax.ShapeDtypeStruct((N, H, W, C), x.dtype)
                        for _ in range(4)),
        grid=(N, C // tc),
        in_specs=[spec, spec, spec],
        out_specs=[spec, spec, spec, spec],
        compiler_params=pltpu.CompilerParams(
            dimension_semantics=("parallel", "parallel")),
    )(x, xwm, xwp)
    row_e = jnp.stack([y00, y01], axis=3)    # (N, H, W, 2, C)
    row_o = jnp.stack([y10, y11], axis=3)
    out = jnp.stack([row_e, row_o], axis=2)  # (N, H, 2, W, 2, C)
    return out.reshape(N, 2 * H, 2 * W, C)


# ---------------------------------------------------------------------------
# Parameters (deterministic synthetic init; BN folded into convs, eval mode).
# Weights stored as [KH*KW, Cin, Cout] bf16, biases f32.
# ---------------------------------------------------------------------------
def _conv_w(key, cin, cout, k):
    std = (2.0 / (cin * k * k)) ** 0.5
    return jax.random.normal(key, (cout, cin, k, k), jnp.float32) * std


def _bn(key, c):
    k1, k2, k3, k4 = jax.random.split(key, 4)
    gamma = 1.0 + 0.1 * jax.random.normal(k1, (c,), jnp.float32)
    beta = 0.1 * jax.random.normal(k2, (c,), jnp.float32)
    mean = 0.1 * jax.random.normal(k3, (c,), jnp.float32)
    var = 1.0 + 0.1 * jnp.abs(jax.random.normal(k4, (c,), jnp.float32))
    return gamma, beta, mean, var


def _fold_bn(w, bn):
    gamma, beta, mean, var = bn
    scale = gamma / jnp.sqrt(var + 1e-5)
    return w * scale[:, None, None, None], beta - mean * scale


def _prep(w, b):
    """(Cout,Cin,KH,KW) f32 torch layout -> (KH*KW, Cin, Cout) bf16 + f32 bias."""
    cout, cin, kh, kw = w.shape
    wt = jnp.transpose(w, (2, 3, 1, 0)).reshape(kh * kw, cin, cout)
    return wt.astype(jnp.bfloat16), b.astype(jnp.float32)


def _conv_bn(keys, cin, cout, k):
    return _prep(*_fold_bn(_conv_w(next(keys), cin, cout, k),
                           _bn(next(keys), cout)))


def _conv_wb(keys, cin, cout, k):
    k1, k2 = jax.random.split(next(keys))
    return _prep(_conv_w(k1, cin, cout, k),
                 jax.random.normal(k2, (cout,), jnp.float32) * 0.01)


def _basic_block_params(keys, cin, cout, stride):
    p = {'stride': stride}
    p['conv1'] = _conv_bn(keys, cin, cout, 3)
    p['conv2'] = _conv_bn(keys, cout, cout, 3)
    if stride != 1 or cin != cout:
        p['down'] = _conv_bn(keys, cin, cout, 1)
    return p


def _layer_params(keys, cin, cout, n_blocks, stride):
    blocks = [_basic_block_params(keys, cin, cout, stride)]
    for _ in range(n_blocks - 1):
        blocks.append(_basic_block_params(keys, cout, cout, 1))
    return blocks


def init_params(key):
    ks = iter(jax.random.split(key, 256))
    nf = 32  # num_filters
    p = {}
    # ResNet34 encoder
    p['conv1'] = _conv_bn(ks, 3, 64, 7)
    p['layer1'] = _layer_params(ks, 64, 64, 3, 1)
    p['layer2'] = _layer_params(ks, 64, 128, 4, 2)
    p['layer3'] = _layer_params(ks, 128, 256, 6, 2)
    p['layer4'] = _layer_params(ks, 256, 512, 3, 2)
    # heads / decoder (is_deconv=False -> Interpolate + ConvRelu + ConvRelu)
    p['head_final'] = _conv_wb(ks, 512, 1, 1)

    def dec(cin, mid, cout):
        return {'conv1': _conv_wb(ks, cin, mid, 3),
                'conv2': _conv_wb(ks, mid, cout, 3)}

    p['center'] = dec(512, nf * 16, nf * 8)            # (512, 512, 256)
    p['dec5'] = dec(512 + nf * 8, nf * 16, nf * 8)     # (768, 512, 256)
    p['dec4'] = dec(256 + nf * 8, nf * 16, nf * 8)     # (512, 512, 256)
    p['dec3'] = dec(128 + nf * 8, nf * 8, nf * 2)      # (384, 256, 64)
    p['dec2'] = dec(64 + nf * 2, nf * 4, nf * 4)       # (128, 128, 128)
    p['dec1_1'] = _conv_wb(ks, nf * 4, nf * 4, 3)
    p['dec1_2'] = _conv_wb(ks, nf * 4, nf, 3)
    p['dec0'] = _conv_wb(ks, nf, nf, 3)
    p['final'] = _conv_wb(ks, nf, 1, 1)
    return p


# ---------------------------------------------------------------------------
# Forward pass (matches AlbuNet.forward), NHWC internally.
# ---------------------------------------------------------------------------
def basic_block(x, p):
    out = conv2d(x, p['conv1'], stride=p['stride'], padding=1, relu=True)
    if 'down' in p:
        identity = conv2d(x, p['down'], stride=p['stride'], padding=0)
    else:
        identity = x
    # conv2 (+folded BN) + residual add + ReLU fused into one kernel epilogue.
    return conv2d(out, p['conv2'], stride=1, padding=1, relu=True,
                  residual=identity)


def run_layer(x, blocks):
    for bp in blocks:
        x = basic_block(x, bp)
    return x


def decoder_block(x, p):
    x = upsample_bilinear_2x(x)
    x = conv2d(x, p['conv1'], stride=1, padding=1, relu=True)
    x = conv2d(x, p['conv2'], stride=1, padding=1, relu=True)
    return x


def albunet_forward(params, x_nchw):
    x = jnp.transpose(x_nchw, (0, 2, 3, 1))  # NCHW -> NHWC once
    # conv1 = Sequential(resnet.conv1, bn1, ReLU, MaxPool2d(3, 2, ceil_mode=True))
    conv1 = conv2d(x, params['conv1'], stride=2, padding=3, relu=True)
    conv1 = maxpool2d(conv1, 3, 2, ceil_mode=True)
    conv2 = run_layer(conv1, params['layer1'])
    conv3 = run_layer(conv2, params['layer2'])
    conv4 = run_layer(conv3, params['layer3'])
    conv5 = run_layer(conv4, params['layer4'])

    head = conv2d(conv5, params['head_final'], stride=1, padding=0)

    # self.pool at forward time is MaxPool2d(2, 2)
    center = decoder_block(maxpool2d(conv5, 2, 2), params['center'])
    dec5 = decoder_block(jnp.concatenate([center, conv5], axis=-1),
                         params['dec5'])
    dec4 = decoder_block(jnp.concatenate([dec5, conv4], axis=-1),
                         params['dec4'])
    dec3 = decoder_block(jnp.concatenate([dec4, conv3], axis=-1),
                         params['dec3'])
    dec2 = decoder_block(jnp.concatenate([dec3, conv2], axis=-1),
                         params['dec2'])
    dec1 = conv2d(dec2, params['dec1_1'], stride=1, padding=1, relu=True)
    dec1 = conv2d(dec1, params['dec1_2'], stride=1, padding=1, relu=True)
    dec0 = conv2d(dec1, params['dec0'], stride=1, padding=1, relu=True)
    x_out = conv2d(dec0, params['final'], stride=1, padding=0)
    # back to NCHW for the public API
    return (jnp.transpose(x_out, (0, 3, 1, 2)),
            jnp.transpose(head, (0, 3, 1, 2)))


if __name__ == "__main__":
    key = jax.random.PRNGKey(0)
    pkey, xkey = jax.random.split(key)
    params = init_params(pkey)
    x = jax.random.normal(xkey, (1, 3, 64, 64), jnp.float32)  # NCHW

    x_out, head = albunet_forward(params, x)
    jax.block_until_ready((x_out, head))

    assert x_out.shape == (1, 1, 32, 32), x_out.shape
    assert head.shape == (1, 1, 2, 2), head.shape
    assert x_out.dtype == jnp.float32 and head.dtype == jnp.float32
    assert bool(jnp.all(jnp.isfinite(x_out))) and bool(jnp.all(jnp.isfinite(head)))
    print("KERNEL_OK")
</pallas_src>

<mosaic_0001>
module attributes {stable_mosaic.version = 11 : i64} {
  func.func @_mm_kernel(%arg0: i32, %arg1: i32, %arg2: memref<512x147xbf16, #tpu.memory_space<vmem>>, %arg3: memref<147x64xbf16, #tpu.memory_space<vmem>>, %arg4: memref<1x64xf32, #tpu.memory_space<vmem>>, %arg5: memref<512x64xf32, #tpu.memory_space<vmem>>) attributes {dimension_semantics = [#tpu.dimension_semantics<parallel>, #tpu.dimension_semantics<parallel>], iteration_bounds = array<i64: 2, 1>, scalar_prefetch = 0 : i64, scratch_operands = 0 : i64, tpu.core_type = #tpu.core_type<tc>, window_params = [{transform_indices = @transform_0, window_bounds = array<i64: 512, 147>}, {transform_indices = @transform_1, window_bounds = array<i64: 147, 64>}, {transform_indices = @transform_2, window_bounds = array<i64: 1, 64>}, {transform_indices = @transform_3, window_bounds = array<i64: 512, 64>}]} {
    %c0 = arith.constant 0 : index
    %c0_0 = arith.constant 0 : index
    %0 = vector.load %arg2[%c0, %c0_0] : memref<512x147xbf16, #tpu.memory_space<vmem>>, vector<512x147xbf16>
    %c0_1 = arith.constant 0 : index
    %c0_2 = arith.constant 0 : index
    %1 = vector.load %arg3[%c0_1, %c0_2] : memref<147x64xbf16, #tpu.memory_space<vmem>>, vector<147x64xbf16>
    %cst = arith.constant dense<0.000000e+00> : vector<512x64xf32>
    %2 = tpu.matmul %0, %1, %cst {dimension_numbers = #tpu.dot_dimension_numbers<[1], [0], [0], [1], [0, 0, 1, 1], [], []>} : vector<512x147xbf16>, vector<147x64xbf16>, vector<512x64xf32> -> vector<512x64xf32>
    %c0_3 = arith.constant 0 : index
    %c0_4 = arith.constant 0 : index
    %3 = vector.load %arg4[%c0_3, %c0_4] : memref<1x64xf32, #tpu.memory_space<vmem>>, vector<1x64xf32>
    %4 = vector.broadcast %3 : vector<1x64xf32> to vector<512x64xf32>
    %5 = arith.addf %2, %4 : vector<512x64xf32>
    %cst_5 = arith.constant 0.000000e+00 : f32
    %6 = vector.broadcast %cst_5 : f32 to vector<512x64xf32>
    %7 = arith.maximumf %5, %6 : vector<512x64xf32>
    %c0_6 = arith.constant 0 : index
    %c0_7 = arith.constant 0 : index
    %8 = vector.load %arg5[%c0_6, %c0_7] : memref<512x64xf32, #tpu.memory_space<vmem>>, vector<512x64xf32>
    tpu.vector_store %arg5[%c0_6, %c0_7], %7 {strides = array<i32>} : memref<512x64xf32, #tpu.memory_space<vmem>>, vector<512x64xf32>,
    return
  }
  func.func @transform_0(%arg0: i32, %arg1: i32) -> (i32, i32) {
    %c0_i32 = arith.constant 0 : i32
    %c0_i32_0 = arith.constant 0 : i32
    return %arg0, %c0_i32 : i32, i32
  }
  func.func @transform_1(%arg0: i32, %arg1: i32) -> (i32, i32) {
    %c0_i32 = arith.constant 0 : i32
    %c0_i32_0 = arith.constant 0 : i32
    return %c0_i32, %arg1 : i32, i32
  }
  func.func @transform_2(%arg0: i32, %arg1: i32) -> (i32, i32) {
    %c0_i32 = arith.constant 0 : i32
    %c0_i32_0 = arith.constant 0 : i32
    return %c0_i32, %arg1 : i32, i32
  }
  func.func @transform_3(%arg0: i32, %arg1: i32) -> (i32, i32) {
    %c0_i32 = arith.constant 0 : i32
    return %arg0, %arg1 : i32, i32
  }
}

</mosaic_0001>

<llo_original>
// kernel: tpu_custom_call.1
$region0: #{tpu_custom_call.1}
  #allocation0 [shape = 'u32[]', space=smem, size = 0x4, offset = 0x4, fixed_abs, tag = 'smem constant byte address 0x4 - core index']
  #allocation1 [shape = 'u32[144,128]{1,0:T(1,128)}', space=vmem, size = 0x12000, scoped, tag = 'internal scratch']
  %s0 = inlined_call_operand.vmem [shape: bf16[1024,147], index: 0, kind: input, shape index: {}]
  %s1 = inlined_call_operand.vmem [shape: bf16[147,64], index: 1, kind: input, shape index: {}]
  %s2 = inlined_call_operand.vmem [shape: f32[1,64], index: 2, kind: input, shape index: {}]
  %s3 = inlined_call_operand.vmem [shape: f32[1024,64], index: 3, kind: output, shape index: {}]
  %s4 = sld [smem:[#allocation0]]
  $region45: #{tpu_custom_call.1} parent=0
    _
  %s6 = ssub.s32 1, %s4
  %s7 = scalar_select 0, %s6, %s4
  loop: start=0, step=1, limit=4
  $region2: #{tpu_custom_call.1} parent=0 // loop_pre_header
    _
  $region3: #{tpu_custom_call.1} parent=0 // loop_header
    %s9 = sphi 0, %s13
    %p10 = scmp.ge.s32.totalorder %s9, 4
    %s16 = sphi 0, %s28
    %s17 = sphi 0, %s24
    %s18 = sphi 0, %s16
    %s19 = sphi 0, %s17
    %s20 = sphi 0, %s18
    %s21 = sphi 0, %s19
    %s31 = sphi 0, %s33
    %s34 = sphi 0, %s31
    %s35 = sphi 0, %s34
    %s51 = sphi 0, %s35
    %s57 = sphi 0, %s59
    %s60 = sphi 0, %s57
    %s61 = sphi 0, %s60
    %s77 = sphi 0, %s61
    %s83 = sphi 0, %s85
    %s86 = sphi 0, %s83
    %s87 = sphi 0, %s86
    %s103 = sphi 0, %s87
    %s111 = sphi 0, %s113
    %s114 = sphi 0, %s111
    %s115 = sphi 0, %s114
    %s131 = sphi 0, %s115
  $region4: #{tpu_custom_call.1} parent=0 // loop_header_branch
    %12 = sbr.rel (%p10) target = $region8
  $region5: #{tpu_custom_call.1} parent=0 // loop_body
    %s14 = ssub.s32 %s9, 1
    %s15 = ssub.s32 %s9, 2
    %s22 = sadd.s32 1, %s17
    %p23 = scmp.ge.s32.totalorder %s22, 1
    %s24 = scalar_select %p23, 0, %s22
    %s25 = sadd.s32 1, %s16
    %s26 = scalar_select %p23, %s25, %s16
    %p27 = scmp.ge.s32.totalorder %s26, 2
    %s28 = scalar_select %p27, 0, %s26
    %s29 = ssub.s32 %s16, %s28
    %p30 = scmp.eq.s32.totalorder %s29, 0
    %s32 = sadd.s32 %s31, 1
    %s33 = scalar_select %p30, %s31, %s32
    %p36 = pneg %p30
    %p37 = scmp.eq.s32.totalorder %s9, 1
    %p38 = por %p36, %p37
    %p39 = scmp.ne.s32.totalorder %s31, %s34
    %p40 = scmp.eq.s32.totalorder %s9, 0
    %p41 = por %p39, %p40
    %p42 = scmp.ne.s32.totalorder %s31, %s34
    %p43 = scmp.eq.s32.totalorder %s14, 1
    %p44 = por %p42, %p43
    %p45 = scmp.ne.s32.totalorder %s34, %s35
    %p46 = scmp.eq.s32.totalorder %s14, 0
    %p47 = por %p45, %p46
    %p48 = scmp.ne.s32.totalorder %s34, %s35
    %p49 = scmp.eq.s32.totalorder %s15, 1
    %p50 = por %p48, %p49
    %p52 = scmp.ne.s32.totalorder %s35, %s51
    %p53 = scmp.eq.s32.totalorder %s15, 0
    %p54 = por %p52, %p53
    %s55 = ssub.s32 %s17, %s24
    %p56 = scmp.eq.s32.totalorder %s55, 0
    %s58 = sadd.s32 %s57, 1
    %s59 = scalar_select %p56, %s57, %s58
    %p62 = pneg %p56
    %p63 = scmp.eq.s32.totalorder %s9, 1
    %p64 = por %p62, %p63
    %p65 = scmp.ne.s32.totalorder %s57, %s60
    %p66 = scmp.eq.s32.totalorder %s9, 0
    %p67 = por %p65, %p66
    %p68 = scmp.ne.s32.totalorder %s57, %s60
    %p69 = scmp.eq.s32.totalorder %s14, 1
    %p70 = por %p68, %p69
    %p71 = scmp.ne.s32.totalorder %s60, %s61
    %p72 = scmp.eq.s32.totalorder %s14, 0
    %p73 = por %p71, %p72
    %p74 = scmp.ne.s32.totalorder %s60, %s61
    %p75 = scmp.eq.s32.totalorder %s15, 1
    %p76 = por %p74, %p75
    %p78 = scmp.ne.s32.totalorder %s61, %s77
    %p79 = scmp.eq.s32.totalorder %s15, 0
    %p80 = por %p78, %p79
    %s81 = ssub.s32 %s17, %s24
    %p82 = scmp.eq.s32.totalorder %s81, 0
    %s84 = sadd.s32 %s83, 1
    %s85 = scalar_select %p82, %s83, %s84
    %p88 = pneg %p82
    %p89 = scmp.eq.s32.totalorder %s9, 1
    %p90 = por %p88, %p89
    %p91 = scmp.ne.s32.totalorder %s83, %s86
    %p92 = scmp.eq.s32.totalorder %s9, 0
    %p93 = por %p91, %p92
    %p94 = scmp.ne.s32.totalorder %s83, %s86
    %p95 = scmp.eq.s32.totalorder %s14, 1
    %p96 = por %p94, %p95
    %p97 = scmp.ne.s32.totalorder %s86, %s87
    %p98 = scmp.eq.s32.totalorder %s14, 0
    %p99 = por %p97, %p98
    %p100 = scmp.ne.s32.totalorder %s86, %s87
    %p101 = scmp.eq.s32.totalorder %s15, 1
    %p102 = por %p100, %p101
    %p104 = scmp.ne.s32.totalorder %s87, %s103
    %p105 = scmp.eq.s32.totalorder %s15, 0
    %p106 = por %p104, %p105
    %s107 = ssub.s32 %s16, %s28
    %s108 = ssub.s32 %s17, %s24
    %s109 = sor.u32 %s107, %s108
    %p110 = scmp.eq.s32.totalorder %s109, 0
    %s112 = sadd.s32 %s111, 1
    %s113 = scalar_select %p110, %s111, %s112
    %p116 = pneg %p110
    %p117 = scmp.eq.s32.totalorder %s9, 1
    %p118 = por %p116, %p117
    %p119 = scmp.ne.s32.totalorder %s111, %s114
    %p120 = scmp.eq.s32.totalorder %s9, 0
    %p121 = por %p119, %p120
    %p122 = scmp.ne.s32.totalorder %s111, %s114
    %p123 = scmp.eq.s32.totalorder %s14, 1
    %p124 = por %p122, %p123
    %p125 = scmp.ne.s32.totalorder %s114, %s115
    %p126 = scmp.eq.s32.totalorder %s14, 0
    %p127 = por %p125, %p126
    %p128 = scmp.ne.s32.totalorder %s114, %s115
    %p129 = scmp.eq.s32.totalorder %s15, 1
    %p130 = por %p128, %p129
    %p132 = scmp.ne.s32.totalorder %s115, %s131
    %p133 = scmp.eq.s32.totalorder %s15, 0
    %p134 = por %p132, %p133
    %p135 = scmp.le.s32.totalorder 1, %s9
    %p136 = scmp.lt.s32.totalorder %s9, 3
    %p137 = pnand %p135, %p136
    %p138 = pneg %p137
    // Predicated region
    $region9: #{tpu_custom_call.1} parent=5 // pred_check
      _
    $region10: #{tpu_custom_call.1} parent=5 // pred_check_branch
      %140 = sbr.rel (%p137) target = $region12
    $region11: #{tpu_custom_call.1} parent=5 // pred_region
      %s141 = ssub.s32 %s9, 1
      // Predicated region
      $region13: #{tpu_custom_call.1} parent=11 // pred_check
        %p142 = pneg %p73
      $region14: #{tpu_custom_call.1} parent=11 // pred_check_branch
        %144 = sbr.rel (%p142) target = $region16
      $region15: #{tpu_custom_call.1} parent=11 // pred_region
        %p145 = scmp.lt.s32.totalorder %s19, 0
        %s146 = scalar_select %p145, %s19, 0
        %s147 = smul.addr %s146, 4
        %s148 = scalar_lea.vmem %s1, %s147
      $region16: #{tpu_custom_call.1} parent=11 // pred_fallthru
        _
      // Predicated region
      $region17: #{tpu_custom_call.1} parent=11 // pred_check
        %p149 = pneg %p99
      $region18: #{tpu_custom_call.1} parent=11 // pred_check_branch
        %151 = sbr.rel (%p149) target = $region20
      $region19: #{tpu_custom_call.1} parent=11 // pred_region
        %p152 = scmp.lt.s32.totalorder %s19, 0
        %s153 = scalar_select %p152, %s19, 0
        %s154 = scalar_lea.vmem %s2, %s153
      $region20: #{tpu_custom_call.1} parent=11 // pred_fallthru
        _
    $region12: #{tpu_custom_call.1} parent=5 // pred_fallthru
      _
    %p155 = scmp.lt.s32.totalorder %s9, 2
    // Predicated region
    $region21: #{tpu_custom_call.1} parent=5 // pred_check
      %p156 = pneg %p155
    $region22: #{tpu_custom_call.1} parent=5 // pred_check_branch
      %158 = sbr.rel (%p156) target = $region24
    $region23: #{tpu_custom_call.1} parent=5 // pred_region
      // Predicated region
      $region25: #{tpu_custom_call.1} parent=23 // pred_check
        %p159 = pneg %p41
      $region26: #{tpu_custom_call.1} parent=23 // pred_check_branch
        %161 = sbr.rel (%p159) target = $region28
      $region27: #{tpu_custom_call.1} parent=23 // pred_region
        %s162 = smul.u32 64, %s16
        %p163 = scmp.lt.s32.totalorder %s162, 127
        %s164 = scalar_select %p163, %s162, 127
        %s165 = smul.addr %s164, 2
        %s166 = smul.addr %s165, 4
        %s167 = scalar_lea.vmem %s0, %s166
        %s168 = smul.u32 64, %s16
      $region28: #{tpu_custom_call.1} parent=23 // pred_fallthru
        _
    $region24: #{tpu_custom_call.1} parent=5 // pred_fallthru
      _
    %p169 = scmp.le.s32.totalorder 1, %s9
    %p170 = scmp.lt.s32.totalorder %s9, 3
    %p171 = pnand %p169, %p170
    %p172 = pneg %p171
    // Predicated region
    $region29: #{tpu_custom_call.1} parent=5 // pred_check
      _
    $region30: #{tpu_custom_call.1} parent=5 // pred_check_branch
      %174 = sbr.rel (%p171) target = $region32
    $region31: #{tpu_custom_call.1} parent=5 // pred_region
      %s175 = ssub.s32 %s9, 1
      %s176 = smul.u32 64, %s18
      %p177 = scmp.lt.s32.totalorder %s176, 127
      %s178 = scalar_select %p177, %s176, 127
      %s179 = smul.addr %s178, 2
      %s180 = smul.addr %s179, 4
      %s181 = scalar_lea.vmem %s0, %s180
      %p182 = pneg %p47
      %p183 = pneg %p44
      %p184 = scmp.lt.s32.totalorder %s19, 0
      %s185 = scalar_select %p184, %s19, 0
      %s186 = smul.addr %s185, 4
      %s187 = scalar_lea.vmem %s1, %s186
      %p188 = pneg %p73
      %p189 = pneg %p70
      %p190 = scmp.lt.s32.totalorder %s19, 0
      %s191 = scalar_select %p190, %s19, 0
      %s192 = scalar_lea.vmem %s2, %s191
      %p193 = pneg %p99
      %p194 = pneg %p96
      %p195 = pneg %p127
      %p196 = pneg %p124
      %s197 = smul.u32 64, %s18
      %p198 = scmp.lt.s32.totalorder %s197, 127
      %s199 = scalar_select %p198, %s197, 127
      %p200 = scmp.lt.s32.totalorder %s19, 0
      %s201 = scalar_select %p200, %s19, 0
      %s202 = sadd.s32 %s201, %s199
      %s203 = smul.addr %s202, 8
      %s204 = scalar_lea.vmem %s3, %s203
      %s205 = smul.u32 64, %s18
      %p206 = scmp.lt.s32.totalorder %s205, 127
      %s207 = scalar_select %p206, %s205, 127
      %s208 = smul.addr %s207, 2
      %s209 = smul.addr %s208, 4
      %s210 = scalar_lea.vmem %s0, %s209
      %s211 = smul.u32 64, %s18
      %p212 = scmp.lt.s32.totalorder %s19, 0
      %s213 = scalar_select %p212, %s19, 0
      %s214 = smul.addr %s213, 4
      %s215 = scalar_lea.vmem %s1, %s214
      %p216 = scmp.lt.s32.totalorder %s19, 0
      %s217 = scalar_select %p216, %s19, 0
      %s218 = scalar_lea.vmem %s2, %s217
      %s219 = smul.u32 64, %s18
      %p220 = scmp.lt.s32.totalorder %s219, 127
      %s221 = scalar_select %p220, %s219, 127
      %p222 = scmp.lt.s32.totalorder %s19, 0
      %s223 = scalar_select %p222, %s19, 0
      %s224 = sadd.s32 %s223, %s221
      %s225 = smul.addr %s224, 8
      %s226 = scalar_lea.vmem %s3, %s225
      %s227 = smul.u32 64, %s18
      %v229 = vld [vmem:[%s210] sm:$0xff]
      %v230 = vld [vmem:[%s210 + $0x8] sm:$0xff]
      %v231 = vld [vmem:[%s210 + $0x10] sm:$0xff]
      %v232 = vld [vmem:[%s210 + $0x18] sm:$0xff]
      %v233 = vld [vmem:[%s210 + $0x20] sm:$0xff]
      %v234 = vld [vmem:[%s210 + $0x28] sm:$0xff]
      %v235 = vld [vmem:[%s210 + $0x30] sm:$0xff]
      %v236 = vld [vmem:[%s210 + $0x38] sm:$0xff]
      %v237 = vld [vmem:[%s210 + $0x40] sm:$0xff]
      %v238 = vld [vmem:[%s210 + $0x48] sm:$0xff]
      %v239 = vld [vmem:[%s210 + $0x50] sm:$0xff]
      %v240 = vld [vmem:[%s210 + $0x58] sm:$0xff]
      %v241 = vld [vmem:[%s210 + $0x60] sm:$0xff]
      %v242 = vld [vmem:[%s210 + $0x68] sm:$0xff]
      %v243 = vld [vmem:[%s210 + $0x70] sm:$0xff]
      %v244 = vld [vmem:[%s210 + $0x78] sm:$0xff]
      %v245 = vld [vmem:[%s210 + $0x80] sm:$0xff]
      %v246 = vld [vmem:[%s210 + $0x88] sm:$0xff]
      %v247 = vld [vmem:[%s210 + $0x90] sm:$0xff]
      %v248 = vld [vmem:[%s210 + $0x98] sm:$0xff]
      %v249 = vld [vmem:[%s210 + $0xa0] sm:$0xff]
      %v250 = vld [vmem:[%s210 + $0xa8] sm:$0xff]
      %v251 = vld [vmem:[%s210 + $0xb0] sm:$0xff]
      %v252 = vld [vmem:[%s210 + $0xb8] sm:$0xff]
      %v253 = vld [vmem:[%s210 + $0xc0] sm:$0xff]
      %v254 = vld [vmem:[%s210 + $0xc8] sm:$0xff]
      %v255 = vld [vmem:[%s210 + $0xd0] sm:$0xff]
      %v256 = vld [vmem:[%s210 + $0xd8] sm:$0xff]
      %v257 = vld [vmem:[%s210 + $0xe0] sm:$0xff]
      %v258 = vld [vmem:[%s210 + $0xe8] sm:$0xff]
      %v259 = vld [vmem:[%s210 + $0xf0] sm:$0xff]
      %v260 = vld [vmem:[%s210 + $0xf8] sm:$0xff]
      %v261 = vld [vmem:[%s210 + $0x100] sm:$0xff]
      %v262 = vld [vmem:[%s210 + $0x108] sm:$0xff]
      %v263 = vld [vmem:[%s210 + $0x110] sm:$0xff]
      %v264 = vld [vmem:[%s210 + $0x118] sm:$0xff]
      %v265 = vld [vmem:[%s210 + $0x120] sm:$0xff]
      %v266 = vld [vmem:[%s210 + $0x128] sm:$0xff]
      %v267 = vld [vmem:[%s210 + $0x130] sm:$0xff]
      %v268 = vld [vmem:[%s210 + $0x138] sm:$0xff]
      %v269 = vld [vmem:[%s210 + $0x140] sm:$0xff]
      %v270 = vld [vmem:[%s210 + $0x148] sm:$0xff]
      %v271 = vld [vmem:[%s210 + $0x150] sm:$0xff]
      %v272 = vld [vmem:[%s210 + $0x158] sm:$0xff]
      %v273 = vld [vmem:[%s210 + $0x160] sm:$0xff]
      %v274 = vld [vmem:[%s210 + $0x168] sm:$0xff]
      %v275 = vld [vmem:[%s210 + $0x170] sm:$0xff]
      %v276 = vld [vmem:[%s210 + $0x178] sm:$0xff]
      %v277 = vld [vmem:[%s210 + $0x180] sm:$0xff]
      %v278 = vld [vmem:[%s210 + $0x188] sm:$0xff]
      %v279 = vld [vmem:[%s210 + $0x190] sm:$0xff]
      %v280 = vld [vmem:[%s210 + $0x198] sm:$0xff]
      %v281 = vld [vmem:[%s210 + $0x1a0] sm:$0xff]
      %v282 = vld [vmem:[%s210 + $0x1a8] sm:$0xff]
      %v283 = vld [vmem:[%s210 + $0x1b0] sm:$0xff]
      %v284 = vld [vmem:[%s210 + $0x1b8] sm:$0xff]
      %v285 = vld [vmem:[%s210 + $0x1c0] sm:$0xff]
      %v286 = vld [vmem:[%s210 + $0x1c8] sm:$0xff]
      %v287 = vld [vmem:[%s210 + $0x1d0] sm:$0xff]
      %v288 = vld [vmem:[%s210 + $0x1d8] sm:$0xff]
      %v289 = vld [vmem:[%s210 + $0x1e0] sm:$0xff]
      %v290 = vld [vmem:[%s210 + $0x1e8] sm:$0xff]
      %v291 = vld [vmem:[%s210 + $0x1f0] sm:$0xff]
      %v292 = vld [vmem:[%s210 + $0x1f8] sm:$0xff]
      %v293 = vld [vmem:[%s215] sm:$0xf]
      %v294 = vld [vmem:[%s215 + $0x4] sm:$0xf]
      %v295 = vld [vmem:[%s215 + $0x8] sm:$0xf]
      %v296 = vld [vmem:[%s215 + $0xc] sm:$0xf]
      %v297 = vld [vmem:[%s215 + $0x10] sm:$0xf]
      %v298 = vld [vmem:[%s215 + $0x14] sm:$0xf]
      %v299 = vld [vmem:[%s215 + $0x18] sm:$0xf]
      %v300 = vld [vmem:[%s215 + $0x1c] sm:$0xf]
      %v301 = vld [vmem:[%s215 + $0x20] sm:$0xf]
      %v302 = vld [vmem:[%s215 + $0x24] sm:$0xf]
      %v303 = vld [vmem:[%s215 + $0x28] sm:$0xf]
      %v304 = vld [vmem:[%s215 + $0x2c] sm:$0xf]
      %v305 = vld [vmem:[%s215 + $0x30] sm:$0xf]
      %v306 = vld [vmem:[%s215 + $0x34] sm:$0xf]
      %v307 = vld [vmem:[%s215 + $0x38] sm:$0xf]
      %v308 = vld [vmem:[%s215 + $0x3c] sm:$0xf]
      %v309 = vld [vmem:[%s215 + $0x40] sm:$0xf]
      %v310 = vld [vmem:[%s215 + $0x44] sm:$0xf]
      %v311 = vld [vmem:[%s215 + $0x48] sm:$0x3]
      %v312 = vld [vmem:[%s218] sm:$0x1]
      %v314 = vlaneseq
      %v315 = vshrl.u32 %v314, 7
      %v316 = vsub.s32 0, %v315
      %v317 = vrot.slane %v312, %v316
      %v383 = vunpack.c.l.b16 %v229
      %v384 = vunpack.c.h.b16 %v229
      %v385 = vunpack.c.l.b16 %v230
      %v386 = vunpack.c.h.b16 %v230
      %v387 = vunpack.c.l.b16 %v231
      %v388 = vunpack.c.h.b16 %v231
      %v389 = vunpack.c.l.b16 %v232
      %v390 = vunpack.c.h.b16 %v232
      %v391 = vunpack.c.l.b16 %v233
      %v392 = vunpack.c.h.b16 %v233
      %v393 = vunpack.c.l.b16 %v234
      %v394 = vunpack.c.h.b16 %v234
      %v395 = vunpack.c.l.b16 %v235
      %v396 = vunpack.c.h.b16 %v235
      %v397 = vunpack.c.l.b16 %v236
      %v398 = vunpack.c.h.b16 %v236
      %v399 = vunpack.c.l.b16 %v237
      %v400 = vunpack.c.h.b16 %v237
      %v401 = vunpack.c.l.b16 %v238
      %v402 = vunpack.c.h.b16 %v238
      %v403 = vunpack.c.l.b16 %v239
      %v404 = vunpack.c.h.b16 %v239
      %v405 = vunpack.c.l.b16 %v240
      %v406 = vunpack.c.h.b16 %v240
      %v407 = vunpack.c.l.b16 %v241
      %v408 = vunpack.c.h.b16 %v241
      %v409 = vunpack.c.l.b16 %v242
      %v410 = vunpack.c.h.b16 %v242
      %v411 = vunpack.c.l.b16 %v243
      %v412 = vunpack.c.h.b16 %v243
      %v413 = vunpack.c.l.b16 %v244
      %v414 = vunpack.c.h.b16 %v244
      %v415 = vunpack.c.l.b16 %v245
      %v416 = vunpack.c.h.b16 %v245
      %v417 = vunpack.c.l.b16 %v246
      %v418 = vunpack.c.h.b16 %v246
      %v419 = vunpack.c.l.b16 %v247
      %v420 = vunpack.c.h.b16 %v247
      %v421 = vunpack.c.l.b16 %v248
      %v422 = vunpack.c.h.b16 %v248
      %v423 = vunpack.c.l.b16 %v249
      %v424 = vunpack.c.h.b16 %v249
      %v425 = vunpack.c.l.b16 %v250
      %v426 = vunpack.c.h.b16 %v250
      %v427 = vunpack.c.l.b16 %v251
      %v428 = vunpack.c.h.b16 %v251
      %v429 = vunpack.c.l.b16 %v252
      %v430 = vunpack.c.h.b16 %v252
      %v431 = vunpack.c.l.b16 %v253
      %v432 = vunpack.c.h.b16 %v253
      %v433 = vunpack.c.l.b16 %v254
      %v434 = vunpack.c.h.b16 %v254
      %v435 = vunpack.c.l.b16 %v255
      %v436 = vunpack.c.h.b16 %v255
      %v437 = vunpack.c.l.b16 %v256
      %v438 = vunpack.c.h.b16 %v256
      %v439 = vunpack.c.l.b16 %v257
      %v440 = vunpack.c.h.b16 %v257
      %v441 = vunpack.c.l.b16 %v258
      %v442 = vunpack.c.h.b16 %v258
      %v443 = vunpack.c.l.b16 %v259
      %v444 = vunpack.c.h.b16 %v259
      %v445 = vunpack.c.l.b16 %v260
      %v446 = vunpack.c.h.b16 %v260
      %v447 = vunpack.c.l.b16 %v261
      %v448 = vunpack.c.h.b16 %v261
      %v449 = vunpack.c.l.b16 %v262
      %v450 = vunpack.c.h.b16 %v262
      %v451 = vunpack.c.l.b16 %v263
      %v452 = vunpack.c.h.b16 %v263
      %v453 = vunpack.c.l.b16 %v264
      %v454 = vunpack.c.h.b16 %v264
      %v455 = vunpack.c.l.b16 %v265
      %v456 = vunpack.c.h.b16 %v265
      %v457 = vunpack.c.l.b16 %v266
      %v458 = vunpack.c.h.b16 %v266
      %v459 = vunpack.c.l.b16 %v267
      %v460 = vunpack.c.h.b16 %v267
      %v461 = vunpack.c.l.b16 %v268
      %v462 = vunpack.c.h.b16 %v268
      %v463 = vunpack.c.l.b16 %v269
      %v464 = vunpack.c.h.b16 %v269
      %v465 = vunpack.c.l.b16 %v270
      %v466 = vunpack.c.h.b16 %v270
      %v467 = vunpack.c.l.b16 %v271
      %v468 = vunpack.c.h.b16 %v271
      %v469 = vunpack.c.l.b16 %v272
      %v470 = vunpack.c.h.b16 %v272
      %v471 = vunpack.c.l.b16 %v273
      %v472 = vunpack.c.h.b16 %v273
      %v473 = vunpack.c.l.b16 %v274
      %v474 = vunpack.c.h.b16 %v274
      %v475 = vunpack.c.l.b16 %v275
      %v476 = vunpack.c.h.b16 %v275
      %v477 = vunpack.c.l.b16 %v276
      %v478 = vunpack.c.h.b16 %v276
      %v479 = vunpack.c.l.b16 %v277
      %v480 = vunpack.c.h.b16 %v277
      %v481 = vunpack.c.l.b16 %v278
      %v482 = vunpack.c.h.b16 %v278
      %v483 = vunpack.c.l.b16 %v279
      %v484 = vunpack.c.h.b16 %v279
      %v485 = vunpack.c.l.b16 %v280
      %v486 = vunpack.c.h.b16 %v280
      %v487 = vunpack.c.l.b16 %v281
      %v488 = vunpack.c.h.b16 %v281
      %v489 = vunpack.c.l.b16 %v282
      %v490 = vunpack.c.h.b16 %v282
      %v491 = vunpack.c.l.b16 %v283
      %v492 = vunpack.c.h.b16 %v283
      %v493 = vunpack.c.l.b16 %v284
      %v494 = vunpack.c.h.b16 %v284
      %v495 = vunpack.c.l.b16 %v285
      %v496 = vunpack.c.h.b16 %v285
      %v497 = vunpack.c.l.b16 %v286
      %v498 = vunpack.c.h.b16 %v286
      %v499 = vunpack.c.l.b16 %v287
      %v500 = vunpack.c.h.b16 %v287
      %v501 = vunpack.c.l.b16 %v288
      %v502 = vunpack.c.h.b16 %v288
      %v503 = vunpack.c.l.b16 %v289
      %v504 = vunpack.c.h.b16 %v289
      %v505 = vunpack.c.l.b16 %v290
      %v506 = vunpack.c.h.b16 %v290
      %v507 = vunpack.c.l.b16 %v291
      %v508 = vunpack.c.h.b16 %v291
      %v509 = vunpack.c.l.b16 %v292
      %v510 = vunpack.c.h.b16 %v292
      %v511 = vpack.c.b16 %v385, %v383
      %v512 = vpack.c.b16 %v386, %v384
      %v513 = vpack.c.b16 %v389, %v387
      %v514 = vpack.c.b16 %v390, %v388
      %v515 = vpack.c.b16 %v393, %v391
      %v516 = vpack.c.b16 %v394, %v392
      %v517 = vpack.c.b16 %v397, %v395
      %v518 = vpack.c.b16 %v398, %v396
      %v519 = vpack.c.b16 %v401, %v399
      %v520 = vpack.c.b16 %v402, %v400
      %v521 = vpack.c.b16 %v405, %v403
      %v522 = vpack.c.b16 %v406, %v404
      %v523 = vpack.c.b16 %v409, %v407
      %v524 = vpack.c.b16 %v410, %v408
      %v525 = vpack.c.b16 %v413, %v411
      %v526 = vpack.c.b16 %v414, %v412
      %v527 = vpack.c.b16 %v417, %v415
      %v528 = vpack.c.b16 %v418, %v416
      %v529 = vpack.c.b16 %v421, %v419
      %v530 = vpack.c.b16 %v422, %v420
      %v531 = vpack.c.b16 %v425, %v423
      %v532 = vpack.c.b16 %v426, %v424
      %v533 = vpack.c.b16 %v429, %v427
      %v534 = vpack.c.b16 %v430, %v428
      %v535 = vpack.c.b16 %v433, %v431
      %v536 = vpack.c.b16 %v434, %v432
      %v537 = vpack.c.b16 %v437, %v435
      %v538 = vpack.c.b16 %v438, %v436
      %v539 = vpack.c.b16 %v441, %v439
      %v540 = vpack.c.b16 %v442, %v440
      %v541 = vpack.c.b16 %v445, %v443
      %v542 = vpack.c.b16 %v446, %v444
      %v543 = vpack.c.b16 %v449, %v447
      %v544 = vpack.c.b16 %v450, %v448
      %v545 = vpack.c.b16 %v453, %v451
      %v546 = vpack.c.b16 %v454, %v452
      %v547 = vpack.c.b16 %v457, %v455
      %v548 = vpack.c.b16 %v458, %v456
      %v549 = vpack.c.b16 %v461, %v459
      %v550 = vpack.c.b16 %v462, %v460
      %v551 = vpack.c.b16 %v465, %v463
      %v552 = vpack.c.b16 %v466, %v464
      %v553 = vpack.c.b16 %v469, %v467
      %v554 = vpack.c.b16 %v470, %v468
      %v555 = vpack.c.b16 %v473, %v471
      %v556 = vpack.c.b16 %v474, %v472
      %v557 = vpack.c.b16 %v477, %v475
      %v558 = vpack.c.b16 %v478, %v476
      %v559 = vpack.c.b16 %v481, %v479
      %v560 = vpack.c.b16 %v482, %v480
      %v561 = vpack.c.b16 %v485, %v483
      %v562 = vpack.c.b16 %v486, %v484
      %v563 = vpack.c.b16 %v489, %v487
      %v564 = vpack.c.b16 %v490, %v488
      %v565 = vpack.c.b16 %v493, %v491
      %v566 = vpack.c.b16 %v494, %v492
      %v567 = vpack.c.b16 %v497, %v495
      %v568 = vpack.c.b16 %v498, %v496
      %v569 = vpack.c.b16 %v501, %v499
      %v570 = vpack.c.b16 %v502, %v500
      %v571 = vpack.c.b16 %v505, %v503
      %v572 = vpack.c.b16 %v506, %v504
      %v573 = vpack.c.b16 %v509, %v507
      %v574 = vpack.c.b16 %v510, %v508
      %v626 = vunpack.c.l.b16 %v293
      %v627 = vunpack.c.l.b16 %v294
      %v628 = vunpack.c.l.b16 %v295
      %v629 = vunpack.c.l.b16 %v296
      %v630 = vunpack.c.l.b16 %v297
      %v631 = vunpack.c.l.b16 %v298
      %v632 = vunpack.c.l.b16 %v299
      %v633 = vunpack.c.l.b16 %v300
      %v634 = vunpack.c.l.b16 %v301
      %v635 = vunpack.c.l.b16 %v302
      %v636 = vunpack.c.l.b16 %v303
      %v637 = vunpack.c.l.b16 %v304
      %v638 = vunpack.c.l.b16 %v305
      %v639 = vunpack.c.l.b16 %v306
      %v640 = vunpack.c.l.b16 %v307
      %v641 = vunpack.c.l.b16 %v308
      %v642 = vunpack.c.l.b16 %v309
      %v643 = vunpack.c.l.b16 %v310
      %v644 = vunpack.c.l.b16 %v311
      %v645 = vpack.c.b16 %v627, %v626
      %v646 = vpack.c.b16 %v629, %v628
      %v647 = vpack.c.b16 %v631, %v630
      %v648 = vpack.c.b16 %v633, %v632
      %v649 = vpack.c.b16 %v635, %v634
      %v650 = vpack.c.b16 %v637, %v636
      %v651 = vpack.c.b16 %v639, %v638
      %v652 = vpack.c.b16 %v641, %v640
      %v653 = vpack.c.b16 %v643, %v642
      %v654 = vpack.c.b16 %v644, %v644
      %vm664 = vcmask 154624
      %v666 = vsel %vm664, %v512, 0
      %v669 = vsel %vm664, %v514, 0
      %v672 = vsel %vm664, %v516, 0
      %v675 = vsel %vm664, %v518, 0
      %v678 = vsel %vm664, %v520, 0
      %v681 = vsel %vm664, %v522, 0
      %v684 = vsel %vm664, %v524, 0
      %v687 = vsel %vm664, %v526, 0
      %v690 = vsel %vm664, %v528, 0
      %v693 = vsel %vm664, %v530, 0
      %v696 = vsel %vm664, %v532, 0
      %v699 = vsel %vm664, %v534, 0
      %v702 = vsel %vm664, %v536, 0
      %v705 = vsel %vm664, %v538, 0
      %v708 = vsel %vm664, %v540, 0
      %v711 = vsel %vm664, %v542, 0
      %v714 = vsel %vm664, %v544, 0
      %v717 = vsel %vm664, %v546, 0
      %v720 = vsel %vm664, %v548, 0
      %v723 = vsel %vm664, %v550, 0
      %v726 = vsel %vm664, %v552, 0
      %v729 = vsel %vm664, %v554, 0
      %v732 = vsel %vm664, %v556, 0
      %v735 = vsel %vm664, %v558, 0
      %v738 = vsel %vm664, %v560, 0
      %v741 = vsel %vm664, %v562, 0
      %v744 = vsel %vm664, %v564, 0
      %v747 = vsel %vm664, %v566, 0
      %v750 = vsel %vm664, %v568, 0
      %v753 = vsel %vm664, %v570, 0
      %v756 = vsel %vm664, %v572, 0
      %v759 = vsel %vm664, %v574, 0
      %vm761 = vcmask 1040384
      %vm762 = vcmask 1041408
      %v763 = vsel %vm761, 4294967295, 65535
      %v764 = vsel %vm762, %v763, 0
      %v766 = vand.u32 %v654, %v764
      %768 = vmatprep.subr.bf16.mxu0 0
      %769 = vmatpush1.bf16.msra.mxu0 %v645
      %770 = vmatprep.subr.bf16.mxu0 0
      %771 = vmatpush1.bf16.msra.mxu0 %v646
      %772 = vmatprep.subr.bf16.mxu0 0
      %773 = vmatpush1.bf16.msra.mxu0 %v647
      %774 = vmatprep.subr.bf16.mxu0 0
      %775 = vmatpush1.bf16.msra.mxu0 %v648
      %776 = vmatprep.subr.bf16.mxu0 0
      %777 = vmatpush1.bf16.msra.mxu0 %v649
      %778 = vmatprep.subr.bf16.mxu0 0
      %779 = vmatpush1.bf16.msra.mxu0 %v650
      %780 = vmatprep.subr.bf16.mxu0 0
      %781 = vmatpush1.bf16.msra.mxu0 %v651
      %782 = vmatprep.subr.bf16.mxu0 0
      %783 = vmatpush1.bf16.msra.mxu0 %v652
      %784 = vmatprep.subr.bf16.mxu0 0
      %785 = vmatpush1.bf16.msra.mxu0 %v653
      %786 = vmatprep.subr.bf16.mxu0 0
      %787 = vmatpush1.bf16.msra.mxu0 %v766
      %788 = vmatprep.subr.bf16.mxu0 0
      %789 = vmatpush1.bf16.msra.mxu0 0
      %790 = vmatprep.subr.bf16.mxu0 0
      %791 = vmatpush1.bf16.msra.mxu0 0
      %792 = vmatprep.subr.bf16.mxu0 0
      %793 = vmatpush1.bf16.msra.mxu0 0
      %794 = vmatprep.subr.bf16.mxu0 0
      %795 = vmatpush1.bf16.msra.mxu0 0
      %796 = vmatprep.subr.bf16.mxu0 0
      %797 = vmatpush1.bf16.msra.mxu0 0
      %798 = vmatprep.subr.bf16.mxu0 0
      %799 = vmatpush1.bf16.msra.mxu0 0
      %800 = vmatprep.mubr.bf16.mxu0 %v666
      %801 = vmatmul.mubr.bf16.gmra.mrb[0].mxu0 %v511
      %v802 = vpop.f32.mrb[0].mxu0
      %v803 = vadd.f32 %v317, %v802
      %v804 = vpop.f32.mrb[0].mxu0
      %v805 = vpop.f32.mrb[0].mxu0
      %v806 = vadd.f32 %v317, %v805
      %v807 = vpop.f32.mrb[0].mxu0
      %808 = vmatprep.mubr.bf16.mxu0 %v669
      %809 = vmatmul.mubr.bf16.gmra.mrb[0].mxu0 %v513
      %v810 = vpop.f32.mrb[0].mxu0
      %v811 = vadd.f32 %v317, %v810
      %v812 = vpop.f32.mrb[0].mxu0
      %v813 = vpop.f32.mrb[0].mxu0
      %v814 = vadd.f32 %v317, %v813
      %v815 = vpop.f32.mrb[0].mxu0
      %816 = vmatprep.mubr.bf16.mxu0 %v672
      %817 = vmatmul.mubr.bf16.gmra.mrb[0].mxu0 %v515
      %v818 = vpop.f32.mrb[0].mxu0
      %v819 = vadd.f32 %v317, %v818
      %v820 = vpop.f32.mrb[0].mxu0
      %v821 = vpop.f32.mrb[0].mxu0
      %v822 = vadd.f32 %v317, %v821
      %v823 = vpop.f32.mrb[0].mxu0
      %824 = vmatprep.mubr.bf16.mxu0 %v675
      %825 = vmatmul.mubr.bf16.gmra.mrb[0].mxu0 %v517
      %v826 = vpop.f32.mrb[0].mxu0
      %v827 = vadd.f32 %v317, %v826
      %v828 = vpop.f32.mrb[0].mxu0
      %v829 = vpop.f32.mrb[0].mxu0
      %v830 = vadd.f32 %v317, %v829
      %v831 = vpop.f32.mrb[0].mxu0
      %832 = vmatprep.mubr.bf16.mxu0 %v678
      %833 = vmatmul.mubr.bf16.gmra.mrb[0].mxu0 %v519
      %v834 = vpop.f32.mrb[0].mxu0
      %v835 = vadd.f32 %v317, %v834
      %v836 = vpop.f32.mrb[0].mxu0
      %v837 = vpop.f32.mrb[0].mxu0
      %v838 = vadd.f32 %v317, %v837
      %v839 = vpop.f32.mrb[0].mxu0
      %840 = vmatprep.mubr.bf16.mxu0 %v681
      %841 = vmatmul.mubr.bf16.gmra.mrb[0].mxu0 %v521
      %v842 = vpop.f32.mrb[0].mxu0
      %v843 = vadd.f32 %v317, %v842
      %v844 = vpop.f32.mrb[0].mxu0
      %v845 = vpop.f32.mrb[0].mxu0
      %v846 = vadd.f32 %v317, %v845
      %v847 = vpop.f32.mrb[0].mxu0
      %848 = vmatprep.mubr.bf16.mxu0 %v684
      %849 = vmatmul.mubr.bf16.gmra.mrb[0].mxu0 %v523
      %v850 = vpop.f32.mrb[0].mxu0
      %v851 = vadd.f32 %v317, %v850
      %v852 = vpop.f32.mrb[0].mxu0
      %v853 = vpop.f32.mrb[0].mxu0
      %v854 = vadd.f32 %v317, %v853
      %v855 = vpop.f32.mrb[0].mxu0
      %856 = vmatprep.mubr.bf16.mxu0 %v687
      %857 = vmatmul.mubr.bf16.gmra.mrb[0].mxu0 %v525
      %v858 = vpop.f32.mrb[0].mxu0
      %v859 = vadd.f32 %v317, %v858
      %v860 = vpop.f32.mrb[0].mxu0
      %v861 = vpop.f32.mrb[0].mxu0
      %v862 = vadd.f32 %v317, %v861
      %v863 = vpop.f32.mrb[0].mxu0
      %864 = vmatprep.mubr.bf16.mxu0 %v690
      %865 = vmatmul.mubr.bf16.gmra.mrb[0].mxu0 %v527
      %v866 = vpop.f32.mrb[0].mxu0
      %v867 = vadd.f32 %v317, %v866
      %v868 = vpop.f32.mrb[0].mxu0
      %v869 = vpop.f32.mrb[0].mxu0
      %v870 = vadd.f32 %v317, %v869
      %v871 = vpop.f32.mrb[0].mxu0
      %872 = vmatprep.mubr.bf16.mxu0 %v693
      %873 = vmatmul.mubr.bf16.gmra.mrb[0].mxu0 %v529
      %v874 = vpop.f32.mrb[0].mxu0
      %v875 = vadd.f32 %v317, %v874
      %v876 = vpop.f32.mrb[0].mxu0
      %v877 = vpop.f32.mrb[0].mxu0
      %v878 = vadd.f32 %v317, %v877
      %v879 = vpop.f32.mrb[0].mxu0
      %880 = vmatprep.mubr.bf16.mxu0 %v696
      %881 = vmatmul.mubr.bf16.gmra.mrb[0].mxu0 %v531
      %v882 = vpop.f32.mrb[0].mxu0
      %v883 = vadd.f32 %v317, %v882
      %v884 = vpop.f32.mrb[0].mxu0
      %v885 = vpop.f32.mrb[0].mxu0
      %v886 = vadd.f32 %v317, %v885
      %v887 = vpop.f32.mrb[0].mxu0
      %888 = vmatprep.mubr.bf16.mxu0 %v699
      %889 = vmatmul.mubr.bf16.gmra.mrb[0].mxu0 %v533
      %v890 = vpop.f32.mrb[0].mxu0
      %v891 = vadd.f32 %v317, %v890
      %v892 = vpop.f32.mrb[0].mxu0
      %v893 = vpop.f32.mrb[0].mxu0
      %v894 = vadd.f32 %v317, %v893
      %v895 = vpop.f32.mrb[0].mxu0
      %896 = vmatprep.mubr.bf16.mxu0 %v702
      %897 = vmatmul.mubr.bf16.gmra.mrb[0].mxu0 %v535
      %v898 = vpop.f32.mrb[0].mxu0
      %v899 = vadd.f32 %v317, %v898
      %v900 = vpop.f32.mrb[0].mxu0
      %v901 = vpop.f32.mrb[0].mxu0
      %v902 = vadd.f32 %v317, %v901
      %v903 = vpop.f32.mrb[0].mxu0
      %904 = vmatprep.mubr.bf16.mxu0 %v705
      %905 = vmatmul.mubr.bf16.gmra.mrb[0].mxu0 %v537
      %v906 = vpop.f32.mrb[0].mxu0
      %v907 = vadd.f32 %v317, %v906
      %v908 = vpop.f32.mrb[0].mxu0
      %v909 = vpop.f32.mrb[0].mxu0
      %v910 = vadd.f32 %v317, %v909
      %v911 = vpop.f32.mrb[0].mxu0
      %912 = vmatprep.mubr.bf16.mxu0 %v708
      %913 = vmatmul.mubr.bf16.gmra.mrb[0].mxu0 %v539
      %v914 = vpop.f32.mrb[0].mxu0
      %v915 = vadd.f32 %v317, %v914
      %v916 = vpop.f32.mrb[0].mxu0
      %v917 = vpop.f32.mrb[0].mxu0
      %v918 = vadd.f32 %v317, %v917
      %v919 = vpop.f32.mrb[0].mxu0
      %920 = vmatprep.mubr.bf16.mxu0 %v711
      %921 = vmatmul.mubr.bf16.gmra.mrb[0].mxu0 %v541
      %v922 = vpop.f32.mrb[0].mxu0
      %v923 = vadd.f32 %v317, %v922
      %v924 = vpop.f32.mrb[0].mxu0
      %v925 = vpop.f32.mrb[0].mxu0
      %v926 = vadd.f32 %v317, %v925
      %v927 = vpop.f32.mrb[0].mxu0
      %928 = vmatprep.mubr.bf16.mxu0 %v714
      %929 = vmatmul.mubr.bf16.gmra.mrb[0].mxu0 %v543
      %v930 = vpop.f32.mrb[0].mxu0
      %v931 = vadd.f32 %v317, %v930
      %v932 = vpop.f32.mrb[0].mxu0
      %v933 = vpop.f32.mrb[0].mxu0
      %v934 = vadd.f32 %v317, %v933
      %v935 = vpop.f32.mrb[0].mxu0
      %936 = vmatprep.mubr.bf16.mxu0 %v717
      %937 = vmatmul.mubr.bf16.gmra.mrb[0].mxu0 %v545
      %v938 = vpop.f32.mrb[0].mxu0
      %v939 = vadd.f32 %v317, %v938
      %v940 = vpop.f32.mrb[0].mxu0
      %v941 = vpop.f32.mrb[0].mxu0
      %v942 = vadd.f32 %v317, %v941
      %v943 = vpop.f32.mrb[0].mxu0
      %944 = vmatprep.mubr.bf16.mxu0 %v720
      %945 = vmatmul.mubr.bf16.gmra.mrb[0].mxu0 %v547
      %v946 = vpop.f32.mrb[0].mxu0
      %v947 = vadd.f32 %v317, %v946
      %v948 = vpop.f32.mrb[0].mxu0
      %v949 = vpop.f32.mrb[0].mxu0
      %v950 = vadd.f32 %v317, %v949
      %v951 = vpop.f32.mrb[0].mxu0
      %952 = vmatprep.mubr.bf16.mxu0 %v723
      %953 = vmatmul.mubr.bf16.gmra.mrb[0].mxu0 %v549
      %v954 = vpop.f32.mrb[0].mxu0
      %v955 = vadd.f32 %v317, %v954
      %v956 = vpop.f32.mrb[0].mxu0
      %v957 = vpop.f32.mrb[0].mxu0
      %v958 = vadd.f32 %v317, %v957
      %v959 = vpop.f32.mrb[0].mxu0
      %960 = vmatprep.mubr.bf16.mxu0 %v726
      %961 = vmatmul.mubr.bf16.gmra.mrb[0].mxu0 %v551
      %v962 = vpop.f32.mrb[0].mxu0
      %v963 = vadd.f32 %v317, %v962
      %v964 = vpop.f32.mrb[0].mxu0
      %v965 = vpop.f32.mrb[0].mxu0
      %v966 = vadd.f32 %v317, %v965
      %v967 = vpop.f32.mrb[0].mxu0
      %968 = vmatprep.mubr.bf16.mxu0 %v729
      %969 = vmatmul.mubr.bf16.gmra.mrb[0].mxu0 %v553
      %v970 = vpop.f32.mrb[0].mxu0
      %v971 = vadd.f32 %v317, %v970
      %v972 = vpop.f32.mrb[0].mxu0
      %v973 = vpop.f32.mrb[0].mxu0
      %v974 = vadd.f32 %v317, %v973
      %v975 = vpop.f32.mrb[0].mxu0
      %976 = vmatprep.mubr.bf16.mxu0 %v732
      %977 = vmatmul.mubr.bf16.gmra.mrb[0].mxu0 %v555
      %v978 = vpop.f32.mrb[0].mxu0
      %v979 = vadd.f32 %v317, %v978
      %v980 = vpop.f32.mrb[0].mxu0
      %v981 = vpop.f32.mrb[0].mxu0
      %v982 = vadd.f32 %v317, %v981
      %v983 = vpop.f32.mrb[0].mxu0
      %984 = vmatprep.mubr.bf16.mxu0 %v735
      %985 = vmatmul.mubr.bf16.gmra.mrb[0].mxu0 %v557
      %v986 = vpop.f32.mrb[0].mxu0
      %v987 = vadd.f32 %v317, %v986
      %v988 = vpop.f32.mrb[0].mxu0
      %v989 = vpop.f32.mrb[0].mxu0
      %v990 = vadd.f32 %v317, %v989
      %v991 = vpop.f32.mrb[0].mxu0
      %992 = vmatprep.mubr.bf16.mxu0 %v738
      %993 = vmatmul.mubr.bf16.gmra.mrb[0].mxu0 %v559
      %v994 = vpop.f32.mrb[0].mxu0
      %v995 = vadd.f32 %v317, %v994
      %v996 = vpop.f32.mrb[0].mxu0
      %v997 = vpop.f32.mrb[0].mxu0
      %v998 = vadd.f32 %v317, %v997
      %v999 = vpop.f32.mrb[0].mxu0
      %1000 = vmatprep.mubr.bf16.mxu0 %v741
      %1001 = vmatmul.mubr.bf16.gmra.mrb[0].mxu0 %v561
      %v1002 = vpop.f32.mrb[0].mxu0
      %v1003 = vadd.f32 %v317, %v1002
      %v1004 = vpop.f32.mrb[0].mxu0
      %v1005 = vpop.f32.mrb[0].mxu0
      %v1006 = vadd.f32 %v317, %v1005
      %v1007 = vpop.f32.mrb[0].mxu0
      %1008 = vmatprep.mubr.bf16.mxu0 %v744
      %1009 = vmatmul.mubr.bf16.gmra.mrb[0].mxu0 %v563
      %v1010 = vpop.f32.mrb[0].mxu0
      %v1011 = vadd.f32 %v317, %v1010
      %v1012 = vpop.f32.mrb[0].mxu0
      %v1013 = vpop.f32.mrb[0].mxu0
      %v1014 = vadd.f32 %v317, %v1013
      %v1015 = vpop.f32.mrb[0].mxu0
      %1016 = vmatprep.mubr.bf16.mxu0 %v747
      %1017 = vmatmul.mubr.bf16.gmra.mrb[0].mxu0 %v565
      %v1018 = vpop.f32.mrb[0].mxu0
      %v1019 = vadd.f32 %v317, %v1018
      %v1020 = vpop.f32.mrb[0].mxu0
      %v1021 = vpop.f32.mrb[0].mxu0
      %v1022 = vadd.f32 %v317, %v1021
      %v1023 = vpop.f32.mrb[0].mxu0
      %1024 = vmatprep.mubr.bf16.mxu0 %v750
      %1025 = vmatmul.mubr.bf16.gmra.mrb[0].mxu0 %v567
      %v1026 = vpop.f32.mrb[0].mxu0
      %v1027 = vadd.f32 %v317, %v1026
      %v1028 = vpop.f32.mrb[0].mxu0
      %v1029 = vpop.f32.mrb[0].mxu0
      %v1030 = vadd.f32 %v317, %v1029
      %v1031 = vpop.f32.mrb[0].mxu0
      %1032 = vmatprep.mubr.bf16.mxu0 %v753
      %1033 = vmatmul.mubr.bf16.gmra.mrb[0].mxu0 %v569
      %v1034 = vpop.f32.mrb[0].mxu0
      %v1035 = vadd.f32 %v317, %v1034
      %v1036 = vpop.f32.mrb[0].mxu0
      %v1037 = vpop.f32.mrb[0].mxu0
      %v1038 = vadd.f32 %v317, %v1037
      %v1039 = vpop.f32.mrb[0].mxu0
      %1040 = vmatprep.mubr.bf16.mxu0 %v756
      %1041 = vmatmul.mubr.bf16.gmra.mrb[0].mxu0 %v571
      %v1042 = vpop.f32.mrb[0].mxu0
      %v1043 = vadd.f32 %v317, %v1042
      %v1044 = vpop.f32.mrb[0].mxu0
      %v1045 = vpop.f32.mrb[0].mxu0
      %v1046 = vadd.f32 %v317, %v1045
      %v1047 = vpop.f32.mrb[0].mxu0
      %1048 = vmatprep.mubr.bf16.mxu0 %v759
      %1049 = vmatmul.mubr.bf16.gmra.mrb[0].mxu0 %v573
      %v1050 = vpop.f32.mrb[0].mxu0
      %v1051 = vadd.f32 %v317, %v1050
      %v1052 = vpop.f32.mrb[0].mxu0
      %v1053 = vpop.f32.mrb[0].mxu0
      %v1054 = vadd.f32 %v317, %v1053
      %v1055 = vpop.f32.mrb[0].mxu0
      %1056 = vdwg.mxu0
      %v1057 = vmax.f32 %v803, 0.0
      %v1058 = vmax.f32 %v806, 0.0
      %v1059 = vmax.f32 %v811, 0.0
      %v1060 = vmax.f32 %v814, 0.0
      %v1061 = vmax.f32 %v819, 0.0
      %v1062 = vmax.f32 %v822, 0.0
      %v1063 = vmax.f32 %v827, 0.0
      %v1064 = vmax.f32 %v830, 0.0
      %v1065 = vmax.f32 %v835, 0.0
      %v1066 = vmax.f32 %v838, 0.0
      %v1067 = vmax.f32 %v843, 0.0
      %v1068 = vmax.f32 %v846, 0.0
      %v1069 = vmax.f32 %v851, 0.0
      %v1070 = vmax.f32 %v854, 0.0
      %v1071 = vmax.f32 %v859, 0.0
      %v1072 = vmax.f32 %v862, 0.0
      %v1073 = vmax.f32 %v867, 0.0
      %v1074 = vmax.f32 %v870, 0.0
      %v1075 = vmax.f32 %v875, 0.0
      %v1076 = vmax.f32 %v878, 0.0
      %v1077 = vmax.f32 %v883, 0.0
      %v1078 = vmax.f32 %v886, 0.0
      %v1079 = vmax.f32 %v891, 0.0
      %v1080 = vmax.f32 %v894, 0.0
      %v1081 = vmax.f32 %v899, 0.0
      %v1082 = vmax.f32 %v902, 0.0
      %v1083 = vmax.f32 %v907, 0.0
      %v1084 = vmax.f32 %v910, 0.0
      %v1085 = vmax.f32 %v915, 0.0
      %v1086 = vmax.f32 %v918, 0.0
      %v1087 = vmax.f32 %v923, 0.0
      %v1088 = vmax.f32 %v926, 0.0
      %v1089 = vmax.f32 %v931, 0.0
      %v1090 = vmax.f32 %v934, 0.0
      %v1091 = vmax.f32 %v939, 0.0
      %v1092 = vmax.f32 %v942, 0.0
      %v1093 = vmax.f32 %v947, 0.0
      %v1094 = vmax.f32 %v950, 0.0
      %v1095 = vmax.f32 %v955, 0.0
      %v1096 = vmax.f32 %v958, 0.0
      %v1097 = vmax.f32 %v963, 0.0
      %v1098 = vmax.f32 %v966, 0.0
      %v1099 = vmax.f32 %v971, 0.0
      %v1100 = vmax.f32 %v974, 0.0
      %v1101 = vmax.f32 %v979, 0.0
      %v1102 = vmax.f32 %v982, 0.0
      %v1103 = vmax.f32 %v987, 0.0
      %v1104 = vmax.f32 %v990, 0.0
      %v1105 = vmax.f32 %v995, 0.0
      %v1106 = vmax.f32 %v998, 0.0
      %v1107 = vmax.f32 %v1003, 0.0
      %v1108 = vmax.f32 %v1006, 0.0
      %v1109 = vmax.f32 %v1011, 0.0
      %v1110 = vmax.f32 %v1014, 0.0
      %v1111 = vmax.f32 %v1019, 0.0
      %v1112 = vmax.f32 %v1022, 0.0
      %v1113 = vmax.f32 %v1027, 0.0
      %v1114 = vmax.f32 %v1030, 0.0
      %v1115 = vmax.f32 %v1035, 0.0
      %v1116 = vmax.f32 %v1038, 0.0
      %v1117 = vmax.f32 %v1043, 0.0
      %v1118 = vmax.f32 %v1046, 0.0
      %v1119 = vmax.f32 %v1051, 0.0
      %v1120 = vmax.f32 %v1054, 0.0
      %vm1121 = vcmask 523264
      %1122 = vst.msk [vmem:[%s226] sm:$0xff] %vm1121, %v1057
      %1123 = vst.msk [vmem:[%s226 + $0x8] sm:$0xff] %vm1121, %v1058
      %1124 = vst.msk [vmem:[%s226 + $0x10] sm:$0xff] %vm1121, %v1059
      %1125 = vst.msk [vmem:[%s226 + $0x18] sm:$0xff] %vm1121, %v1060
      %1126 = vst.msk [vmem:[%s226 + $0x20] sm:$0xff] %vm1121, %v1061
      %1127 = vst.msk [vmem:[%s226 + $0x28] sm:$0xff] %vm1121, %v1062
      %1128 = vst.msk [vmem:[%s226 + $0x30] sm:$0xff] %vm1121, %v1063
      %1129 = vst.msk [vmem:[%s226 + $0x38] sm:$0xff] %vm1121, %v1064
      %1130 = vst.msk [vmem:[%s226 + $0x40] sm:$0xff] %vm1121, %v1065
      %1131 = vst.msk [vmem:[%s226 + $0x48] sm:$0xff] %vm1121, %v1066
      %1132 = vst.msk [vmem:[%s226 + $0x50] sm:$0xff] %vm1121, %v1067
      %1133 = vst.msk [vmem:[%s226 + $0x58] sm:$0xff] %vm1121, %v1068
      %1134 = vst.msk [vmem:[%s226 + $0x60] sm:$0xff] %vm1121, %v1069
      %1135 = vst.msk [vmem:[%s226 + $0x68] sm:$0xff] %vm1121, %v1070
      %1136 = vst.msk [vmem:[%s226 + $0x70] sm:$0xff] %vm1121, %v1071
      %1137 = vst.msk [vmem:[%s226 + $0x78] sm:$0xff] %vm1121, %v1072
      %1138 = vst.msk [vmem:[%s226 + $0x80] sm:$0xff] %vm1121, %v1073
      %1139 = vst.msk [vmem:[%s226 + $0x88] sm:$0xff] %vm1121, %v1074
      %1140 = vst.msk [vmem:[%s226 + $0x90] sm:$0xff] %vm1121, %v1075
      %1141 = vst.msk [vmem:[%s226 + $0x98] sm:$0xff] %vm1121, %v1076
      %1142 = vst.msk [vmem:[%s226 + $0xa0] sm:$0xff] %vm1121, %v1077
      %1143 = vst.msk [vmem:[%s226 + $0xa8] sm:$0xff] %vm1121, %v1078
      %1144 = vst.msk [vmem:[%s226 + $0xb0] sm:$0xff] %vm1121, %v1079
      %1145 = vst.msk [vmem:[%s226 + $0xb8] sm:$0xff] %vm1121, %v1080
      %1146 = vst.msk [vmem:[%s226 + $0xc0] sm:$0xff] %vm1121, %v1081
      %1147 = vst.msk [vmem:[%s226 + $0xc8] sm:$0xff] %vm1121, %v1082
      %1148 = vst.msk [vmem:[%s226 + $0xd0] sm:$0xff] %vm1121, %v1083
      %1149 = vst.msk [vmem:[%s226 + $0xd8] sm:$0xff] %vm1121, %v1084
      %1150 = vst.msk [vmem:[%s226 + $0xe0] sm:$0xff] %vm1121, %v1085
      %1151 = vst.msk [vmem:[%s226 + $0xe8] sm:$0xff] %vm1121, %v1086
      %1152 = vst.msk [vmem:[%s226 + $0xf0] sm:$0xff] %vm1121, %v1087
      %1153 = vst.msk [vmem:[%s226 + $0xf8] sm:$0xff] %vm1121, %v1088
      %1154 = vst.msk [vmem:[%s226 + $0x100] sm:$0xff] %vm1121, %v1089
      %1155 = vst.msk [vmem:[%s226 + $0x108] sm:$0xff] %vm1121, %v1090
      %1156 = vst.msk [vmem:[%s226 + $0x110] sm:$0xff] %vm1121, %v1091
      %1157 = vst.msk [vmem:[%s226 + $0x118] sm:$0xff] %vm1121, %v1092
      %1158 = vst.msk [vmem:[%s226 + $0x120] sm:$0xff] %vm1121, %v1093
      %1159 = vst.msk [vmem:[%s226 + $0x128] sm:$0xff] %vm1121, %v1094
      %1160 = vst.msk [vmem:[%s226 + $0x130] sm:$0xff] %vm1121, %v1095
      %1161 = vst.msk [vmem:[%s226 + $0x138] sm:$0xff] %vm1121, %v1096
      %1162 = vst.msk [vmem:[%s226 + $0x140] sm:$0xff] %vm1121, %v1097
      %1163 = vst.msk [vmem:[%s226 + $0x148] sm:$0xff] %vm1121, %v1098
      %1164 = vst.msk [vmem:[%s226 + $0x150] sm:$0xff] %vm1121, %v1099
      %1165 = vst.msk [vmem:[%s226 + $0x158] sm:$0xff] %vm1121, %v1100
      %1166 = vst.msk [vmem:[%s226 + $0x160] sm:$0xff] %vm1121, %v1101
      %1167 = vst.msk [vmem:[%s226 + $0x168] sm:$0xff] %vm1121, %v1102
      %1168 = vst.msk [vmem:[%s226 + $0x170] sm:$0xff] %vm1121, %v1103
      %1169 = vst.msk [vmem:[%s226 + $0x178] sm:$0xff] %vm1121, %v1104
      %1170 = vst.msk [vmem:[%s226 + $0x180] sm:$0xff] %vm1121, %v1105
      %1171 = vst.msk [vmem:[%s226 + $0x188] sm:$0xff] %vm1121, %v1106
      %1172 = vst.msk [vmem:[%s226 + $0x190] sm:$0xff] %vm1121, %v1107
      %1173 = vst.msk [vmem:[%s226 + $0x198] sm:$0xff] %vm1121, %v1108
      %1174 = vst.msk [vmem:[%s226 + $0x1a0] sm:$0xff] %vm1121, %v1109
      %1175 = vst.msk [vmem:[%s226 + $0x1a8] sm:$0xff] %vm1121, %v1110
      %1176 = vst.msk [vmem:[%s226 + $0x1b0] sm:$0xff] %vm1121, %v1111
      %1177 = vst.msk [vmem:[%s226 + $0x1b8] sm:$0xff] %vm1121, %v1112
      %1178 = vst.msk [vmem:[%s226 + $0x1c0] sm:$0xff] %vm1121, %v1113
      %1179 = vst.msk [vmem:[%s226 + $0x1c8] sm:$0xff] %vm1121, %v1114
      %1180 = vst.msk [vmem:[%s226 + $0x1d0] sm:$0xff] %vm1121, %v1115
      %1181 = vst.msk [vmem:[%s226 + $0x1d8] sm:$0xff] %vm1121, %v1116
      %1182 = vst.msk [vmem:[%s226 + $0x1e0] sm:$0xff] %vm1121, %v1117
      %1183 = vst.msk [vmem:[%s226 + $0x1e8] sm:$0xff] %vm1121, %v1118
      %1184 = vst.msk [vmem:[%s226 + $0x1f0] sm:$0xff] %vm1121, %v1119
      %1185 = vst.msk [vmem:[%s226 + $0x1f8] sm:$0xff] %vm1121, %v1120
      %s1186 = smul.u32 64, %s18
      %p1187 = scmp.lt.s32.totalorder %s1186, 127
      %s1188 = scalar_select %p1187, %s1186, 127
      %p1189 = scmp.lt.s32.totalorder %s19, 0
      %s1190 = scalar_select %p1189, %s19, 0
      %s1191 = sadd.s32 %s1190, %s1188
      %s1192 = smul.addr %s1191, 8
      %s1193 = scalar_lea.vmem %s3, %s1192
      // Predicated region
      $region33: #{tpu_custom_call.1} parent=31 // pred_check
        %p1194 = pneg %p124
      $region34: #{tpu_custom_call.1} parent=31 // pred_check_branch
        %1196 = sbr.rel (%p1194) target = $region36
      $region35: #{tpu_custom_call.1} parent=31 // pred_region
        %s1197 = smul.u32 64, %s18
      $region36: #{tpu_custom_call.1} parent=31 // pred_fallthru
        _
    $region32: #{tpu_custom_call.1} parent=5 // pred_fallthru
      _
    %p1198 = scmp.le.s32.totalorder 2, %s9
    // Predicated region
    $region37: #{tpu_custom_call.1} parent=5 // pred_check
      %p1199 = pneg %p1198
    $region38: #{tpu_custom_call.1} parent=5 // pred_check_branch
      %1201 = sbr.rel (%p1199) target = $region40
    $region39: #{tpu_custom_call.1} parent=5 // pred_region
      %s1202 = ssub.s32 %s9, 2
      // Predicated region
      $region41: #{tpu_custom_call.1} parent=39 // pred_check
        %p1203 = pneg %p130
      $region42: #{tpu_custom_call.1} parent=39 // pred_check_branch
        %1205 = sbr.rel (%p1203) target = $region44
      $region43: #{tpu_custom_call.1} parent=39 // pred_region
        %s1206 = smul.u32 64, %s20
        %p1207 = scmp.lt.s32.totalorder %s1206, 127
        %s1208 = scalar_select %p1207, %s1206, 127
        %p1209 = scmp.lt.s32.totalorder %s21, 0
        %s1210 = scalar_select %p1209, %s21, 0
        %s1211 = sadd.s32 %s1210, %s1208
        %s1212 = smul.addr %s1211, 8
        %s1213 = scalar_lea.vmem %s3, %s1212
      $region44: #{tpu_custom_call.1} parent=39 // pred_fallthru
        _
    $region40: #{tpu_custom_call.1} parent=5 // pred_fallthru
      _
  $region6: #{tpu_custom_call.1} parent=0 // loop_footer
    %s13 = sadd.s32 1, %s9
  $region7: #{tpu_custom_call.1} parent=0 // loop_footer_branch
    %8 = sbr.rel target = $region3
  $region8: #{tpu_custom_call.1} parent=0 // loop_exit
    _

</llo_original>
